<compile_context>
chip_gen: v7x
topology: tpu7x:2x2x1
jax: 0.10.0
libtpu: 0.0.40
codegen_flags: <defaults>
</compile_context>

<pallas_src>
import functools

import jax
import jax.numpy as jnp
from jax.experimental import pallas as pl
from jax.experimental.pallas import tpu as pltpu


def _int_pow(u, n: int):
    """u**n for compile-time integer n >= 1 via exponentiation by squaring (pure VPU)."""
    result = None
    base = u
    while n > 0:
        if n & 1:
            result = base if result is None else result * base
        n >>= 1
        if n:
            base = base * base
    return result


def _poly_cutoff_kernel(x_ref, o_ref, *, p: float, inv_r_max: float, r_max: float):
    # Elementwise hot path - runs entirely on the VPU.
    x = x_ref[...]
    u = x * inv_r_max
    if float(p) == int(p) and int(p) >= 1:
        u_p = _int_pow(u, int(p))          # integer power: pure multiplies, no EUP
    else:
        u_p = jnp.power(u, p)              # fallback for non-integer p
    # envelope = 1 - (p+1)(p+2)/2 u^p + p(p+2) u^(p+1) - p(p+1)/2 u^(p+2)
    #          = 1 + u^p * (c0 + u*(c1 + u*c2))       (Horner form)
    c0 = -(p + 1.0) * (p + 2.0) / 2.0
    c1 = p * (p + 2.0)
    c2 = -p * (p + 1.0) / 2.0
    envelope = 1.0 + u_p * (c0 + u * (c1 + u * c2))
    o_ref[...] = jnp.where(x < r_max, envelope, 0.0).astype(o_ref.dtype)


def polynomial_cutoff(x: jnp.ndarray, r_max: float, p: float = 6.0,
                      *, lanes: int = 1024, max_block_rows: int = 512) -> jnp.ndarray:
    """Pallas implementation of PolynomialCutoff.forward for an arbitrary-shaped x."""
    orig_shape = x.shape
    orig_dtype = x.dtype

    flat = x.reshape(-1)
    n = flat.shape[0]

    # Lane-dense 2-D layout: (rows, lanes), lanes a large multiple of 128.
    rows = pl.cdiv(n, lanes)
    # ~2 MiB f32 blocks (512 x 1024), shrunk (in multiples of 8 sublanes) for tiny inputs.
    block_rows = min(max_block_rows, pl.cdiv(rows, 8) * 8)
    rows_padded = pl.cdiv(rows, block_rows) * block_rows
    total_padded = rows_padded * lanes

    padded = total_padded != n
    if padded:
        flat = jnp.pad(flat, (0, total_padded - n))
    x2d = flat.reshape(rows_padded, lanes)

    kernel = functools.partial(
        _poly_cutoff_kernel,
        p=float(p),
        inv_r_max=1.0 / float(r_max),
        r_max=float(r_max),
    )

    out2d = pl.pallas_call(
        kernel,
        out_shape=jax.ShapeDtypeStruct(x2d.shape, orig_dtype),
        grid_spec=pl.GridSpec(
            grid=(rows_padded // block_rows,),
            in_specs=[pl.BlockSpec((block_rows, lanes), lambda i: (i, 0))],
            out_specs=pl.BlockSpec((block_rows, lanes), lambda i: (i, 0)),
        ),
        compiler_params=pltpu.CompilerParams(
            dimension_semantics=("parallel",)),
    )(x2d)

    if padded:
        return out2d.reshape(-1)[:n].reshape(orig_shape)
    return out2d.reshape(orig_shape)


def polynomial_cutoff_ref(x: jnp.ndarray, r_max: float, p: float = 6.0) -> jnp.ndarray:
    """Pure-JAX reference matching the PyTorch forward exactly."""
    u = x / r_max
    envelope = (
        1.0
        - (p + 1.0) * (p + 2.0) / 2.0 * jnp.power(u, p)
        + p * (p + 2.0) * jnp.power(u, p + 1.0)
        - p * (p + 1.0) / 2.0 * jnp.power(u, p + 2.0)
    )
    return envelope * (x < r_max).astype(x.dtype)


if __name__ == "__main__":
    # Deterministic "parameters" (module buffers): r_max and p.
    r_max = 5.0
    p = 6.0

    key = jax.random.PRNGKey(0)

    # Small deterministic input consistent with the module (edge distances of
    # arbitrary shape): (2, 4, 16, 16) in [0, 1.5 * r_max).
    x = jax.random.uniform(key, (2, 4, 16, 16), dtype=jnp.float32,
                           minval=0.0, maxval=1.5 * r_max)

    out = polynomial_cutoff(x, r_max=r_max, p=p)
    out = jax.block_until_ready(out)
    ref = polynomial_cutoff_ref(x, r_max=r_max, p=p)
    assert out.shape == x.shape and out.dtype == x.dtype
    assert jnp.allclose(out, ref, atol=1e-5, rtol=1e-4), "mismatch vs reference"

    # Ragged size (exercises the padding / non-divisible path).
    x2 = jax.random.uniform(jax.random.PRNGKey(1), (1000,), dtype=jnp.float32,
                            minval=0.0, maxval=1.5 * r_max)
    out2 = jax.block_until_ready(polynomial_cutoff(x2, r_max=r_max, p=p))
    ref2 = polynomial_cutoff_ref(x2, r_max=r_max, p=p)
    assert out2.shape == x2.shape and out2.dtype == x2.dtype
    assert jnp.allclose(out2, ref2, atol=1e-5, rtol=1e-4), "mismatch vs reference (ragged)"

    # Exactly-divisible size (exercises the no-padding fast path).
    x3 = jax.random.uniform(jax.random.PRNGKey(2), (8, 1024), dtype=jnp.float32,
                            minval=0.0, maxval=1.5 * r_max)
    out3 = jax.block_until_ready(polynomial_cutoff(x3, r_max=r_max, p=p))
    ref3 = polynomial_cutoff_ref(x3, r_max=r_max, p=p)
    assert out3.shape == x3.shape and out3.dtype == x3.dtype
    assert jnp.allclose(out3, ref3, atol=1e-5, rtol=1e-4), "mismatch vs reference (exact)"

    print("KERNEL_OK")
</pallas_src>

<mosaic_0001>
module attributes {stable_mosaic.version = 11 : i64} {
  func.func @_poly_cutoff_kernel(%arg0: i32, %arg1: memref<8x1024xf32, #tpu.memory_space<vmem>>, %arg2: memref<8x1024xf32, #tpu.memory_space<vmem>>) attributes {dimension_semantics = [#tpu.dimension_semantics<parallel>], iteration_bounds = array<i64: 1>, scalar_prefetch = 0 : i64, scratch_operands = 0 : i64, tpu.core_type = #tpu.core_type<tc>, window_params = [{transform_indices = @transform_0, window_bounds = array<i64: 8, 1024>}, {transform_indices = @transform_1, window_bounds = array<i64: 8, 1024>}]} {
    %c0 = arith.constant 0 : index
    %c0_0 = arith.constant 0 : index
    %0 = vector.load %arg1[%c0, %c0_0] : memref<8x1024xf32, #tpu.memory_space<vmem>>, vector<8x1024xf32>
    %cst = arith.constant 2.000000e-01 : f32
    %1 = vector.broadcast %cst : f32 to vector<8x1024xf32>
    %2 = arith.mulf %0, %1 : vector<8x1024xf32>
    %3 = arith.mulf %2, %2 : vector<8x1024xf32>
    %4 = arith.mulf %3, %3 : vector<8x1024xf32>
    %5 = arith.mulf %3, %4 : vector<8x1024xf32>
    %cst_1 = arith.constant -2.100000e+01 : f32
    %6 = vector.broadcast %cst_1 : f32 to vector<8x1024xf32>
    %7 = arith.mulf %2, %6 : vector<8x1024xf32>
    %cst_2 = arith.constant 4.800000e+01 : f32
    %8 = vector.broadcast %cst_2 : f32 to vector<8x1024xf32>
    %9 = arith.addf %8, %7 : vector<8x1024xf32>
    %10 = arith.mulf %2, %9 : vector<8x1024xf32>
    %cst_3 = arith.constant -2.800000e+01 : f32
    %11 = vector.broadcast %cst_3 : f32 to vector<8x1024xf32>
    %12 = arith.addf %11, %10 : vector<8x1024xf32>
    %13 = arith.mulf %5, %12 : vector<8x1024xf32>
    %cst_4 = arith.constant 1.000000e+00 : f32
    %14 = vector.broadcast %cst_4 : f32 to vector<8x1024xf32>
    %15 = arith.addf %14, %13 : vector<8x1024xf32>
    %cst_5 = arith.constant 5.000000e+00 : f32
    %16 = vector.broadcast %cst_5 : f32 to vector<8x1024xf32>
    %17 = arith.cmpf olt, %0, %16 : vector<8x1024xf32>
    %cst_6 = arith.constant 0.000000e+00 : f32
    %18 = vector.broadcast %cst_6 : f32 to vector<8x1024xf32>
    %19 = arith.select %17, %15, %18 : vector<8x1024xi1>, vector<8x1024xf32>
    %c0_7 = arith.constant 0 : index
    %c0_8 = arith.constant 0 : index
    %20 = vector.load %arg2[%c0_7, %c0_8] : memref<8x1024xf32, #tpu.memory_space<vmem>>, vector<8x1024xf32>
    tpu.vector_store %arg2[%c0_7, %c0_8], %19 {strides = array<i32>} : memref<8x1024xf32, #tpu.memory_space<vmem>>, vector<8x1024xf32>,
    return
  }
  func.func @transform_0(%arg0: i32) -> (i32, i32) {
    %c0_i32 = arith.constant 0 : i32
    %c0_i32_0 = arith.constant 0 : i32
    return %arg0, %c0_i32 : i32, i32
  }
  func.func @transform_1(%arg0: i32) -> (i32, i32) {
    %c0_i32 = arith.constant 0 : i32
    %c0_i32_0 = arith.constant 0 : i32
    return %arg0, %c0_i32 : i32, i32
  }
}

</mosaic_0001>

<llo_original>
// kernel: tpu_custom_call.1
$region0: #{tpu_custom_call.1}
  #allocation0 [shape = 'u32[]', space=smem, size = 0x4, offset = 0x4, fixed_abs, tag = 'smem constant byte address 0x4 - core index']
  #allocation1 [shape = 'u32[144,128]{1,0:T(1,128)}', space=vmem, size = 0x12000, scoped, tag = 'internal scratch']
  %s0 = inlined_call_operand.hbm [shape: f32[8,1024], index: 0, kind: input, shape index: {}]
  %s1 = inlined_call_operand.hbm [shape: f32[8,1024], index: 1, kind: output, shape index: {}]
  %s2 = sld [smem:[#allocation0]]
  $region18: #{tpu_custom_call.1} parent=0
    _
  %s4 = ssub.s32 1, %s2
  %s5 = scalar_select 0, %s4, %s2
  $region1: #{tpu_custom_call.1} parent=0
    #allocation2 [shape = 'u8[32768]{0}', space=vmem, size = 0x8000, scoped, tag = 'input window, operand 0, single buffered']
    #allocation3 [shape = 's32[1]{0}', space=sflag, size = 0x4, scoped, tag = 'scoped memory for tpu_custom_call.1']
    #allocation4 [shape = 's32[1]{0}', space=sflag, size = 0x4, scoped, tag = 'scoped memory for tpu_custom_call.1']
    #allocation5 [shape = 'u8[32768]{0}', space=vmem, size = 0x8000, scoped, tag = 'output window, operand 0, single buffered']
    %6 = vsyncpa [#allocation3], 0
    %7 = vsyncpa [#allocation4], 0
    // Predicated region
    $region2: #{tpu_custom_call.1} parent=1 // pred_check
      _
    $region3: #{tpu_custom_call.1} parent=1 // pred_check_branch
      %9 = sbr.rel (0) target = $region5
    $region4: #{tpu_custom_call.1} parent=1 // pred_region
      %s11 = ssub.s32 1024, 1024
      %12 = vsyncadd [#allocation3], %s11
      %s14 = sshll.u32 [#allocation2], 4
      %s15 = int_to_ptr.vmem [resolvable:$true] %s14
      %17 = dma.hbm_to_vmem [thread:$0]  %s0, 1024, %s15, [#allocation3]
    $region5: #{tpu_custom_call.1} parent=1 // pred_fallthru
      _
    // Predicated region
    $region6: #{tpu_custom_call.1} parent=1 // pred_check
      _
    $region7: #{tpu_custom_call.1} parent=1 // pred_check_branch
      %19 = sbr.rel (0) target = $region9
    $region8: #{tpu_custom_call.1} parent=1 // pred_region
      %20 = dma.done [#allocation3], 1024
    $region9: #{tpu_custom_call.1} parent=1 // pred_fallthru
      _
    %v21 = vld [vmem:[#allocation2] sm:$0xff]
    %v22 = vld [vmem:[#allocation2 + $0x8] sm:$0xff]
    %v23 = vld [vmem:[#allocation2 + $0x10] sm:$0xff]
    %v24 = vld [vmem:[#allocation2 + $0x18] sm:$0xff]
    %v25 = vld [vmem:[#allocation2 + $0x20] sm:$0xff]
    %v26 = vld [vmem:[#allocation2 + $0x28] sm:$0xff]
    %v27 = vld [vmem:[#allocation2 + $0x30] sm:$0xff]
    %v28 = vld [vmem:[#allocation2 + $0x38] sm:$0xff]
    %v29 = vmul.f32 %v21, 0.2
    %v30 = vmul.f32 %v22, 0.2
    %v31 = vmul.f32 %v23, 0.2
    %v32 = vmul.f32 %v24, 0.2
    %v33 = vmul.f32 %v25, 0.2
    %v34 = vmul.f32 %v26, 0.2
    %v35 = vmul.f32 %v27, 0.2
    %v36 = vmul.f32 %v28, 0.2
    %v37 = vmul.f32 %v29, %v29
    %v38 = vmul.f32 %v30, %v30
    %v39 = vmul.f32 %v31, %v31
    %v40 = vmul.f32 %v32, %v32
    %v41 = vmul.f32 %v33, %v33
    %v42 = vmul.f32 %v34, %v34
    %v43 = vmul.f32 %v35, %v35
    %v44 = vmul.f32 %v36, %v36
    %v45 = vmul.f32 %v37, %v37
    %v46 = vmul.f32 %v38, %v38
    %v47 = vmul.f32 %v39, %v39
    %v48 = vmul.f32 %v40, %v40
    %v49 = vmul.f32 %v41, %v41
    %v50 = vmul.f32 %v42, %v42
    %v51 = vmul.f32 %v43, %v43
    %v52 = vmul.f32 %v44, %v44
    %v53 = vmul.f32 %v37, %v45
    %v54 = vmul.f32 %v38, %v46
    %v55 = vmul.f32 %v39, %v47
    %v56 = vmul.f32 %v40, %v48
    %v57 = vmul.f32 %v41, %v49
    %v58 = vmul.f32 %v42, %v50
    %v59 = vmul.f32 %v43, %v51
    %v60 = vmul.f32 %v44, %v52
    %v61 = vmul.f32 %v29, -21.0
    %v62 = vmul.f32 %v30, -21.0
    %v63 = vmul.f32 %v31, -21.0
    %v64 = vmul.f32 %v32, -21.0
    %v65 = vmul.f32 %v33, -21.0
    %v66 = vmul.f32 %v34, -21.0
    %v67 = vmul.f32 %v35, -21.0
    %v68 = vmul.f32 %v36, -21.0
    %v69 = vadd.f32 %v61, 48.0
    %v70 = vadd.f32 %v62, 48.0
    %v71 = vadd.f32 %v63, 48.0
    %v72 = vadd.f32 %v64, 48.0
    %v73 = vadd.f32 %v65, 48.0
    %v74 = vadd.f32 %v66, 48.0
    %v75 = vadd.f32 %v67, 48.0
    %v76 = vadd.f32 %v68, 48.0
    %v77 = vmul.f32 %v29, %v69
    %v78 = vmul.f32 %v30, %v70
    %v79 = vmul.f32 %v31, %v71
    %v80 = vmul.f32 %v32, %v72
    %v81 = vmul.f32 %v33, %v73
    %v82 = vmul.f32 %v34, %v74
    %v83 = vmul.f32 %v35, %v75
    %v84 = vmul.f32 %v36, %v76
    %v85 = vadd.f32 %v77, -28.0
    %v86 = vadd.f32 %v78, -28.0
    %v87 = vadd.f32 %v79, -28.0
    %v88 = vadd.f32 %v80, -28.0
    %v89 = vadd.f32 %v81, -28.0
    %v90 = vadd.f32 %v82, -28.0
    %v91 = vadd.f32 %v83, -28.0
    %v92 = vadd.f32 %v84, -28.0
    %v93 = vmul.f32 %v53, %v85
    %v94 = vmul.f32 %v54, %v86
    %v95 = vmul.f32 %v55, %v87
    %v96 = vmul.f32 %v56, %v88
    %v97 = vmul.f32 %v57, %v89
    %v98 = vmul.f32 %v58, %v90
    %v99 = vmul.f32 %v59, %v91
    %v100 = vmul.f32 %v60, %v92
    %v101 = vadd.f32 %v93, 1.0
    %v102 = vadd.f32 %v94, 1.0
    %v103 = vadd.f32 %v95, 1.0
    %v104 = vadd.f32 %v96, 1.0
    %v105 = vadd.f32 %v97, 1.0
    %v106 = vadd.f32 %v98, 1.0
    %v107 = vadd.f32 %v99, 1.0
    %v108 = vadd.f32 %v100, 1.0
    %vm109 = vcmp.lt.f32.partialorder %v21, 5.0
    %vm110 = vcmp.lt.f32.partialorder %v22, 5.0
    %vm111 = vcmp.lt.f32.partialorder %v23, 5.0
    %vm112 = vcmp.lt.f32.partialorder %v24, 5.0
    %vm113 = vcmp.lt.f32.partialorder %v25, 5.0
    %vm114 = vcmp.lt.f32.partialorder %v26, 5.0
    %vm115 = vcmp.lt.f32.partialorder %v27, 5.0
    %vm116 = vcmp.lt.f32.partialorder %v28, 5.0
    %v117 = vsel %vm109, %v101, 0.0
    %v118 = vsel %vm110, %v102, 0.0
    %v119 = vsel %vm111, %v103, 0.0
    %v120 = vsel %vm112, %v104, 0.0
    %v121 = vsel %vm113, %v105, 0.0
    %v122 = vsel %vm114, %v106, 0.0
    %v123 = vsel %vm115, %v107, 0.0
    %v124 = vsel %vm116, %v108, 0.0
    %125 = vst [vmem:[#allocation5] sm:$0xff] %v117
    %126 = vst [vmem:[#allocation5 + $0x8] sm:$0xff] %v118
    %127 = vst [vmem:[#allocation5 + $0x10] sm:$0xff] %v119
    %128 = vst [vmem:[#allocation5 + $0x18] sm:$0xff] %v120
    %129 = vst [vmem:[#allocation5 + $0x20] sm:$0xff] %v121
    %130 = vst [vmem:[#allocation5 + $0x28] sm:$0xff] %v122
    %131 = vst [vmem:[#allocation5 + $0x30] sm:$0xff] %v123
    %132 = vst [vmem:[#allocation5 + $0x38] sm:$0xff] %v124
    // Predicated region
    $region10: #{tpu_custom_call.1} parent=1 // pred_check
      _
    $region11: #{tpu_custom_call.1} parent=1 // pred_check_branch
      %134 = sbr.rel (0) target = $region13
    $region12: #{tpu_custom_call.1} parent=1 // pred_region
      %s136 = ssub.s32 1024, 1024
      %137 = vsyncadd [#allocation4], %s136
      %s139 = sshll.u32 [#allocation5], 4
      %s140 = int_to_ptr.vmem [resolvable:$true] %s139
      %142 = dma.vmem_to_hbm [thread:$0]  %s140, 1024, %s1, [#allocation4]
    $region13: #{tpu_custom_call.1} parent=1 // pred_fallthru
      _
    // Predicated region
    $region14: #{tpu_custom_call.1} parent=1 // pred_check
      _
    $region15: #{tpu_custom_call.1} parent=1 // pred_check_branch
      %144 = sbr.rel (0) target = $region17
    $region16: #{tpu_custom_call.1} parent=1 // pred_region
      %145 = dma.done [#allocation4], 1024
    $region17: #{tpu_custom_call.1} parent=1 // pred_fallthru
      _
    %146 = vsyncpa [#allocation3], 1
    %147 = vsyncpa [#allocation4], 1

</llo_original>
